<compile_context>
chip_gen: v7x
topology: tpu7x:2x2x1
jax: 0.10.0
libtpu: 0.0.40
codegen_flags: <defaults>
</compile_context>

<pallas_src>
import functools

import jax
import jax.numpy as jnp
import numpy as np
from jax.experimental import pallas as pl
from jax.experimental.pallas import tpu as pltpu


def _round_up(x, m):
    return ((x + m - 1) // m) * m


def _fused_decoder_kernel(*refs, num_groups):
    """One grid step: a rows-tile of every input -> a rows-tile of the output.

    Positional refs (matching in_specs order, output last):
      [0]              xf_ref : (tile_n, C*total_bands)      flattened feature
      [1 : 1+G]        xe_ref : (tile_n, C*bands_g)          flattened skip inputs
      [1+G]            wf_ref : (C*total_bands, full_freq)   block-diag feature weight
      [2+G : 2+2G]     we_ref : (C*bands_g, full_freq)       block-diag skip weights
      [2+2G]           b_ref  : (1, full_freq)               band-tiled bias
      [3+2G]           out_ref: (tile_n, full_freq)
    """
    xf_ref = refs[0]
    xe_refs = refs[1:1 + num_groups]
    wf_ref = refs[1 + num_groups]
    we_refs = refs[2 + num_groups:2 + 2 * num_groups]
    b_ref = refs[2 + 2 * num_groups]
    out_ref = refs[3 + 2 * num_groups]

    acc = jnp.dot(xf_ref[...], wf_ref[...], preferred_element_type=jnp.float32)
    for xe_ref, we_ref in zip(xe_refs, we_refs):          # static, small G
        acc = acc + jnp.dot(xe_ref[...], we_ref[...],
                            preferred_element_type=jnp.float32)
    acc = acc + b_ref[...]
    out_ref[...] = jnp.maximum(acc, 0.0).astype(out_ref.dtype)


def _embed_group_params(params, bands_num_in_groups, channels, total_bands):
    """Fold per-group Linear(2C -> width_g) weights into block-diagonal matrices.

    Returns
      wf   : (C*total_bands, full_freq)    acts on flattened feature
      wes  : list of (C*bands_g, full_freq) acting on each flattened skip input
      bias : (1, full_freq)                bias tiled per band
    The zero structure reproduces exactly: per band j of group g,
      out[:, off_g + j*w_g + o] = sum_c f[:, c, band]*W_g[c, o]
                                 + sum_c enc_g[:, c, j]*W_g[C+c, o] + b_g[o]
    """
    dtype = params[0][0].dtype
    widths = [w.shape[1] for (w, _) in params]
    col_sizes = [bands * width for bands, width in zip(bands_num_in_groups, widths)]
    full_freq = int(sum(col_sizes))

    wf_full = jnp.zeros((channels, total_bands, full_freq), dtype)
    we_mats = []
    bias_cols = []

    start = 0
    off = 0
    for (w, b), bands, width, csz in zip(params, bands_num_in_groups, widths,
                                         col_sizes):
        assert w.shape == (2 * channels, width)
        eye = jnp.eye(bands, dtype=dtype)                       # (bands, bands)
        # feature half W[:C]:  blk_f[c, j, j'*w+o] = eye[j, j'] * W[c, o]
        blk_f = (eye[None, :, :, None] *
                 w[:channels][:, None, None, :]).reshape(channels, bands, csz)
        wf_full = wf_full.at[:, start:start + bands, off:off + csz].set(blk_f)
        # encoder half W[C:]
        blk_e = (eye[None, :, :, None] *
                 w[channels:][:, None, None, :]).reshape(channels, bands, csz)
        we_g = jnp.zeros((channels, bands, full_freq), dtype)
        we_g = we_g.at[:, :, off:off + csz].set(blk_e)
        we_mats.append(we_g.reshape(channels * bands, full_freq))
        bias_cols.append(jnp.tile(b, bands))
        start += bands
        off += csz

    wf = wf_full.reshape(channels * total_bands, full_freq)
    bias = jnp.concatenate(bias_cols).reshape(1, full_freq).astype(dtype)
    return wf, we_mats, bias, full_freq


def full_band_decoder(feature, sub_encodes, params, bands_num_in_groups, *,
                      tile_n=128):
    """Fused FSPEN decoder: returns (N, full_frequency)."""
    n, channels, total_bands = feature.shape
    assert sum(bands_num_in_groups) == total_bands
    num_groups = len(bands_num_in_groups)
    dtype = feature.dtype

    # --- wrapper-side layout work (kept OUT of the kernel) ------------------
    wf, we_mats, bias2d, full_freq = _embed_group_params(
        params, bands_num_in_groups, channels, total_bands)
    xf = feature.reshape(n, channels * total_bands)            # cheap XLA reshape
    xes = [enc.reshape(n, channels * bands)
           for enc, bands in zip(sub_encodes, bands_num_in_groups)]

    # --- row tiling: large tiles, pad N so any batch*frames works -----------
    tile_n = min(tile_n, _round_up(n, 8))
    tile_n = max(8, (tile_n // 8) * 8)
    n_pad = _round_up(n, tile_n)
    if n_pad != n:
        pad = n_pad - n
        xf = jnp.pad(xf, ((0, pad), (0, 0)))
        xes = [jnp.pad(xe, ((0, pad), (0, 0))) for xe in xes]
    grid = (n_pad // tile_n,)

    # --- specs ---------------------------------------------------------------
    in_specs = [pl.BlockSpec((tile_n, channels * total_bands), lambda i: (i, 0))]
    in_specs += [pl.BlockSpec((tile_n, channels * bands), lambda i: (i, 0))
                 for bands in bands_num_in_groups]
    in_specs += [pl.BlockSpec(wf.shape, lambda i: (0, 0))]
    in_specs += [pl.BlockSpec(we.shape, lambda i: (0, 0)) for we in we_mats]
    in_specs += [pl.BlockSpec((1, full_freq), lambda i: (0, 0))]
    out_spec = pl.BlockSpec((tile_n, full_freq), lambda i: (i, 0))

    itemsize = jnp.dtype(dtype).itemsize
    k_total = channels * total_bands
    flops = 2 * n_pad * full_freq * 2 * k_total          # two block-diag matmul halves
    bytes_accessed = itemsize * (
        xf.size + sum(int(xe.size) for xe in xes) + int(wf.size)
        + sum(int(we.size) for we in we_mats) + int(bias2d.size)
        + n_pad * full_freq)
    cost = pl.CostEstimate(flops=int(flops), transcendentals=0,
                           bytes_accessed=int(bytes_accessed))

    kernel = functools.partial(_fused_decoder_kernel, num_groups=num_groups)

    out = pl.pallas_call(
        kernel,
        out_shape=jax.ShapeDtypeStruct((n_pad, full_freq), dtype),
        grid_spec=pltpu.PrefetchScalarGridSpec(
            num_scalar_prefetch=0,
            grid=grid,
            in_specs=in_specs,
            out_specs=out_spec,
        ),
        compiler_params=pltpu.CompilerParams(
            dimension_semantics=("parallel",)),
        cost_estimate=cost,
    )(xf, *xes, wf, *we_mats, bias2d)

    return out[:n] if n_pad != n else out


def full_band_decoder_reference(feature, sub_encodes, params, bands_num_in_groups):
    """Pure-JAX reference mirroring the PyTorch forward."""
    outs = []
    start = 0
    for (w, b), enc, bands in zip(params, sub_encodes, bands_num_in_groups):
        end = start + bands
        f = feature[:, :, start:end]                         # (N, C, bands)
        x = jnp.concatenate([f, enc], axis=1)                # (N, 2C, bands)
        x = jnp.transpose(x, (0, 2, 1))                      # (N, bands, 2C)
        y = jnp.maximum(x @ w + b, 0.0)                      # (N, bands, width)
        outs.append(y.reshape(y.shape[0], -1))
        start = end
    return jnp.concatenate(outs, axis=1)


if __name__ == "__main__":
    # Small synthetic config (per-group Linear(2C -> width) decoder blocks).
    batch, frames = 2, 128
    n = batch * frames                      # 256 rows -> grid of 2 with tile_n=128
    channels = 4
    bands_num_in_groups = [4, 4]            # total_bands = 8
    band_widths = [2, 3]                    # per-group output width
    total_bands = sum(bands_num_in_groups)

    key = jax.random.PRNGKey(0)
    k_feat, k_enc0, k_enc1, k_w0, k_b0, k_w1, k_b1 = jax.random.split(key, 7)

    feature = jax.random.normal(k_feat, (n, channels, total_bands), jnp.float32)
    sub_encodes = [
        jax.random.normal(k_enc0, (n, channels, bands_num_in_groups[0]), jnp.float32),
        jax.random.normal(k_enc1, (n, channels, bands_num_in_groups[1]), jnp.float32),
    ]

    # Deterministic Linear params, stored (in_features=2C, out_features=width).
    params = []
    for kw, kb, width in zip((k_w0, k_w1), (k_b0, k_b1), band_widths):
        bound = 1.0 / np.sqrt(2 * channels)
        w = jax.random.uniform(kw, (2 * channels, width), jnp.float32, -bound, bound)
        b = jax.random.uniform(kb, (width,), jnp.float32, -bound, bound)
        params.append((w, b))

    out = full_band_decoder(feature, sub_encodes, params, bands_num_in_groups,
                            tile_n=128)
    out = jax.block_until_ready(out)

    ref = full_band_decoder_reference(feature, sub_encodes, params,
                                      bands_num_in_groups)
    expected_freq = sum(b * w for b, w in zip(bands_num_in_groups, band_widths))
    assert out.shape == (n, expected_freq), out.shape
    np.testing.assert_allclose(np.asarray(out), np.asarray(ref),
                               rtol=1e-5, atol=1e-5)

    print("KERNEL_OK")
</pallas_src>

<mosaic_0001>
module attributes {stable_mosaic.version = 11 : i64} {
  func.func @_fused_decoder_kernel(%arg0: i32, %arg1: memref<128x32xf32, #tpu.memory_space<vmem>>, %arg2: memref<128x16xf32, #tpu.memory_space<vmem>>, %arg3: memref<128x16xf32, #tpu.memory_space<vmem>>, %arg4: memref<32x20xf32, #tpu.memory_space<vmem>>, %arg5: memref<16x20xf32, #tpu.memory_space<vmem>>, %arg6: memref<16x20xf32, #tpu.memory_space<vmem>>, %arg7: memref<1x20xf32, #tpu.memory_space<vmem>>, %arg8: memref<128x20xf32, #tpu.memory_space<vmem>>) attributes {dimension_semantics = [#tpu.dimension_semantics<parallel>], iteration_bounds = array<i64: 2>, scalar_prefetch = 0 : i64, scratch_operands = 0 : i64, tpu.core_type = #tpu.core_type<tc>, window_params = [{transform_indices = @transform_0, window_bounds = array<i64: 128, 32>}, {transform_indices = @transform_1, window_bounds = array<i64: 128, 16>}, {transform_indices = @transform_2, window_bounds = array<i64: 128, 16>}, {pipeline_mode = #tpu.pipeline_mode<synchronous>, transform_indices = @transform_3, window_bounds = array<i64: 32, 20>}, {pipeline_mode = #tpu.pipeline_mode<synchronous>, transform_indices = @transform_4, window_bounds = array<i64: 16, 20>}, {pipeline_mode = #tpu.pipeline_mode<synchronous>, transform_indices = @transform_5, window_bounds = array<i64: 16, 20>}, {pipeline_mode = #tpu.pipeline_mode<synchronous>, transform_indices = @transform_6, window_bounds = array<i64: 1, 20>}, {transform_indices = @transform_7, window_bounds = array<i64: 128, 20>}]} {
    %c0 = arith.constant 0 : index
    %c0_0 = arith.constant 0 : index
    %0 = vector.load %arg1[%c0, %c0_0] : memref<128x32xf32, #tpu.memory_space<vmem>>, vector<128x32xf32>
    %c0_1 = arith.constant 0 : index
    %c0_2 = arith.constant 0 : index
    %1 = vector.load %arg4[%c0_1, %c0_2] : memref<32x20xf32, #tpu.memory_space<vmem>>, vector<32x20xf32>
    %cst = arith.constant dense<0.000000e+00> : vector<128x20xf32>
    %2 = tpu.matmul %0, %1, %cst {dimension_numbers = #tpu.dot_dimension_numbers<[1], [0], [0], [1], [0, 0, 1, 1], [], []>} : vector<128x32xf32>, vector<32x20xf32>, vector<128x20xf32> -> vector<128x20xf32>
    %c0_3 = arith.constant 0 : index
    %c0_4 = arith.constant 0 : index
    %3 = vector.load %arg2[%c0_3, %c0_4] : memref<128x16xf32, #tpu.memory_space<vmem>>, vector<128x16xf32>
    %c0_5 = arith.constant 0 : index
    %c0_6 = arith.constant 0 : index
    %4 = vector.load %arg5[%c0_5, %c0_6] : memref<16x20xf32, #tpu.memory_space<vmem>>, vector<16x20xf32>
    %cst_7 = arith.constant dense<0.000000e+00> : vector<128x20xf32>
    %5 = tpu.matmul %3, %4, %cst_7 {dimension_numbers = #tpu.dot_dimension_numbers<[1], [0], [0], [1], [0, 0, 1, 1], [], []>} : vector<128x16xf32>, vector<16x20xf32>, vector<128x20xf32> -> vector<128x20xf32>
    %6 = arith.addf %2, %5 : vector<128x20xf32>
    %c0_8 = arith.constant 0 : index
    %c0_9 = arith.constant 0 : index
    %7 = vector.load %arg3[%c0_8, %c0_9] : memref<128x16xf32, #tpu.memory_space<vmem>>, vector<128x16xf32>
    %c0_10 = arith.constant 0 : index
    %c0_11 = arith.constant 0 : index
    %8 = vector.load %arg6[%c0_10, %c0_11] : memref<16x20xf32, #tpu.memory_space<vmem>>, vector<16x20xf32>
    %cst_12 = arith.constant dense<0.000000e+00> : vector<128x20xf32>
    %9 = tpu.matmul %7, %8, %cst_12 {dimension_numbers = #tpu.dot_dimension_numbers<[1], [0], [0], [1], [0, 0, 1, 1], [], []>} : vector<128x16xf32>, vector<16x20xf32>, vector<128x20xf32> -> vector<128x20xf32>
    %10 = arith.addf %6, %9 : vector<128x20xf32>
    %c0_13 = arith.constant 0 : index
    %c0_14 = arith.constant 0 : index
    %11 = vector.load %arg7[%c0_13, %c0_14] : memref<1x20xf32, #tpu.memory_space<vmem>>, vector<1x20xf32>
    %12 = vector.broadcast %11 : vector<1x20xf32> to vector<128x20xf32>
    %13 = arith.addf %10, %12 : vector<128x20xf32>
    %cst_15 = arith.constant 0.000000e+00 : f32
    %14 = vector.broadcast %cst_15 : f32 to vector<128x20xf32>
    %15 = arith.maximumf %13, %14 : vector<128x20xf32>
    %c0_16 = arith.constant 0 : index
    %c0_17 = arith.constant 0 : index
    %16 = vector.load %arg8[%c0_16, %c0_17] : memref<128x20xf32, #tpu.memory_space<vmem>>, vector<128x20xf32>
    tpu.vector_store %arg8[%c0_16, %c0_17], %15 {strides = array<i32>} : memref<128x20xf32, #tpu.memory_space<vmem>>, vector<128x20xf32>,
    return
  }
  func.func @transform_0(%arg0: i32) -> (i32, i32) {
    %c0_i32 = arith.constant 0 : i32
    %c0_i32_0 = arith.constant 0 : i32
    return %arg0, %c0_i32 : i32, i32
  }
  func.func @transform_1(%arg0: i32) -> (i32, i32) {
    %c0_i32 = arith.constant 0 : i32
    %c0_i32_0 = arith.constant 0 : i32
    return %arg0, %c0_i32 : i32, i32
  }
  func.func @transform_2(%arg0: i32) -> (i32, i32) {
    %c0_i32 = arith.constant 0 : i32
    %c0_i32_0 = arith.constant 0 : i32
    return %arg0, %c0_i32 : i32, i32
  }
  func.func @transform_3(%arg0: i32) -> (i32, i32) {
    %c0_i32 = arith.constant 0 : i32
    %c0_i32_0 = arith.constant 0 : i32
    %c0_i32_1 = arith.constant 0 : i32
    return %c0_i32, %c0_i32_0 : i32, i32
  }
  func.func @transform_4(%arg0: i32) -> (i32, i32) {
    %c0_i32 = arith.constant 0 : i32
    %c0_i32_0 = arith.constant 0 : i32
    %c0_i32_1 = arith.constant 0 : i32
    return %c0_i32, %c0_i32_0 : i32, i32
  }
  func.func @transform_5(%arg0: i32) -> (i32, i32) {
    %c0_i32 = arith.constant 0 : i32
    %c0_i32_0 = arith.constant 0 : i32
    %c0_i32_1 = arith.constant 0 : i32
    return %c0_i32, %c0_i32_0 : i32, i32
  }
  func.func @transform_6(%arg0: i32) -> (i32, i32) {
    %c0_i32 = arith.constant 0 : i32
    %c0_i32_0 = arith.constant 0 : i32
    %c0_i32_1 = arith.constant 0 : i32
    return %c0_i32, %c0_i32_0 : i32, i32
  }
  func.func @transform_7(%arg0: i32) -> (i32, i32) {
    %c0_i32 = arith.constant 0 : i32
    %c0_i32_0 = arith.constant 0 : i32
    return %arg0, %c0_i32 : i32, i32
  }
}

</mosaic_0001>

<llo_original>
// kernel: tpu_custom_call.1
$region0: #{tpu_custom_call.1}
  #allocation0 [shape = 'u32[]', space=smem, size = 0x4, offset = 0x4, fixed_abs, tag = 'smem constant byte address 0x4 - core index']
  #allocation1 [shape = 'u32[144,128]{1,0:T(1,128)}', space=vmem, size = 0x12000, scoped, tag = 'internal scratch']
  %s0 = inlined_call_operand.vmem [shape: f32[256,32], index: 0, kind: input, shape index: {}]
  %s1 = inlined_call_operand.vmem [shape: f32[256,16], index: 1, kind: input, shape index: {}]
  %s2 = inlined_call_operand.vmem [shape: f32[256,16], index: 2, kind: input, shape index: {}]
  %s3 = inlined_call_operand.vmem [shape: f32[32,20], index: 3, kind: input, shape index: {}]
  %s4 = inlined_call_operand.vmem [shape: f32[16,20], index: 4, kind: input, shape index: {}]
  %s5 = inlined_call_operand.vmem [shape: f32[16,20], index: 5, kind: input, shape index: {}]
  %s6 = inlined_call_operand.vmem [shape: f32[1,20], index: 6, kind: input, shape index: {}]
  %s7 = inlined_call_operand.vmem [shape: f32[256,20], index: 7, kind: output, shape index: {}]
  %s8 = sld [smem:[#allocation0]]
  $region61: #{tpu_custom_call.1} parent=0
    _
  %s10 = ssub.s32 1, %s8
  %s11 = scalar_select 0, %s10, %s8
  loop: start=0, step=1, limit=4
  $region2: #{tpu_custom_call.1} parent=0 // loop_pre_header
    _
  $region3: #{tpu_custom_call.1} parent=0 // loop_header
    %s13 = sphi 0, %s17
    %p14 = scmp.ge.s32.totalorder %s13, 4
    %s23 = sphi 0, %s25
    %s26 = sphi 0, %s23
    %s27 = sphi 0, %s26
    %s43 = sphi 0, %s27
    %s49 = sphi 0, %s51
    %s52 = sphi 0, %s49
    %s53 = sphi 0, %s52
    %s69 = sphi 0, %s53
    %s75 = sphi 0, %s77
    %s78 = sphi 0, %s75
    %s79 = sphi 0, %s78
    %s95 = sphi 0, %s79
    %s99 = sphi 0, %s99
    %s101 = sphi 0, %s99
    %s102 = sphi 0, %s101
    %s116 = sphi 0, %s102
    %s120 = sphi 0, %s120
    %s122 = sphi 0, %s120
    %s123 = sphi 0, %s122
    %s137 = sphi 0, %s123
    %s141 = sphi 0, %s141
    %s143 = sphi 0, %s141
    %s144 = sphi 0, %s143
    %s158 = sphi 0, %s144
    %s162 = sphi 0, %s162
    %s164 = sphi 0, %s162
    %s165 = sphi 0, %s164
    %s179 = sphi 0, %s165
    %s185 = sphi 0, %s187
    %s188 = sphi 0, %s185
    %s189 = sphi 0, %s188
    %s205 = sphi 0, %s189
  $region4: #{tpu_custom_call.1} parent=0 // loop_header_branch
    %16 = sbr.rel (%p14) target = $region8
  $region5: #{tpu_custom_call.1} parent=0 // loop_body
    %s18 = ssub.s32 %s13, 1
    %s19 = ssub.s32 %s13, 2
    %s20 = sadd.s32 %s13, 1
    %s21 = ssub.s32 %s13, %s20
    %p22 = scmp.eq.s32.totalorder %s21, 0
    %s24 = sadd.s32 %s23, 1
    %s25 = scalar_select %p22, %s23, %s24
    %p28 = pneg %p22
    %p29 = scmp.eq.s32.totalorder %s13, 1
    %p30 = por %p28, %p29
    %p31 = scmp.ne.s32.totalorder %s23, %s26
    %p32 = scmp.eq.s32.totalorder %s13, 0
    %p33 = por %p31, %p32
    %p34 = scmp.ne.s32.totalorder %s23, %s26
    %p35 = scmp.eq.s32.totalorder %s18, 1
    %p36 = por %p34, %p35
    %p37 = scmp.ne.s32.totalorder %s26, %s27
    %p38 = scmp.eq.s32.totalorder %s18, 0
    %p39 = por %p37, %p38
    %p40 = scmp.ne.s32.totalorder %s26, %s27
    %p41 = scmp.eq.s32.totalorder %s19, 1
    %p42 = por %p40, %p41
    %p44 = scmp.ne.s32.totalorder %s27, %s43
    %p45 = scmp.eq.s32.totalorder %s19, 0
    %p46 = por %p44, %p45
    %s47 = ssub.s32 %s13, %s20
    %p48 = scmp.eq.s32.totalorder %s47, 0
    %s50 = sadd.s32 %s49, 1
    %s51 = scalar_select %p48, %s49, %s50
    %p54 = pneg %p48
    %p55 = scmp.eq.s32.totalorder %s13, 1
    %p56 = por %p54, %p55
    %p57 = scmp.ne.s32.totalorder %s49, %s52
    %p58 = scmp.eq.s32.totalorder %s13, 0
    %p59 = por %p57, %p58
    %p60 = scmp.ne.s32.totalorder %s49, %s52
    %p61 = scmp.eq.s32.totalorder %s18, 1
    %p62 = por %p60, %p61
    %p63 = scmp.ne.s32.totalorder %s52, %s53
    %p64 = scmp.eq.s32.totalorder %s18, 0
    %p65 = por %p63, %p64
    %p66 = scmp.ne.s32.totalorder %s52, %s53
    %p67 = scmp.eq.s32.totalorder %s19, 1
    %p68 = por %p66, %p67
    %p70 = scmp.ne.s32.totalorder %s53, %s69
    %p71 = scmp.eq.s32.totalorder %s19, 0
    %p72 = por %p70, %p71
    %s73 = ssub.s32 %s13, %s20
    %p74 = scmp.eq.s32.totalorder %s73, 0
    %s76 = sadd.s32 %s75, 1
    %s77 = scalar_select %p74, %s75, %s76
    %p80 = pneg %p74
    %p81 = scmp.eq.s32.totalorder %s13, 1
    %p82 = por %p80, %p81
    %p83 = scmp.ne.s32.totalorder %s75, %s78
    %p84 = scmp.eq.s32.totalorder %s13, 0
    %p85 = por %p83, %p84
    %p86 = scmp.ne.s32.totalorder %s75, %s78
    %p87 = scmp.eq.s32.totalorder %s18, 1
    %p88 = por %p86, %p87
    %p89 = scmp.ne.s32.totalorder %s78, %s79
    %p90 = scmp.eq.s32.totalorder %s18, 0
    %p91 = por %p89, %p90
    %p92 = scmp.ne.s32.totalorder %s78, %s79
    %p93 = scmp.eq.s32.totalorder %s19, 1
    %p94 = por %p92, %p93
    %p96 = scmp.ne.s32.totalorder %s79, %s95
    %p97 = scmp.eq.s32.totalorder %s19, 0
    %p98 = por %p96, %p97
    %s100 = sadd.s32 %s99, 1
    %p103 = scmp.eq.s32.totalorder %s13, 1
    %p104 = scmp.ne.s32.totalorder %s99, %s101
    %p105 = scmp.eq.s32.totalorder %s13, 0
    %p106 = por %p104, %p105
    %p107 = scmp.ne.s32.totalorder %s99, %s101
    %p108 = scmp.eq.s32.totalorder %s18, 1
    %p109 = por %p107, %p108
    %p110 = scmp.ne.s32.totalorder %s101, %s102
    %p111 = scmp.eq.s32.totalorder %s18, 0
    %p112 = por %p110, %p111
    %p113 = scmp.ne.s32.totalorder %s101, %s102
    %p114 = scmp.eq.s32.totalorder %s19, 1
    %p115 = por %p113, %p114
    %p117 = scmp.ne.s32.totalorder %s102, %s116
    %p118 = scmp.eq.s32.totalorder %s19, 0
    %p119 = por %p117, %p118
    %s121 = sadd.s32 %s120, 1
    %p124 = scmp.eq.s32.totalorder %s13, 1
    %p125 = scmp.ne.s32.totalorder %s120, %s122
    %p126 = scmp.eq.s32.totalorder %s13, 0
    %p127 = por %p125, %p126
    %p128 = scmp.ne.s32.totalorder %s120, %s122
    %p129 = scmp.eq.s32.totalorder %s18, 1
    %p130 = por %p128, %p129
    %p131 = scmp.ne.s32.totalorder %s122, %s123
    %p132 = scmp.eq.s32.totalorder %s18, 0
    %p133 = por %p131, %p132
    %p134 = scmp.ne.s32.totalorder %s122, %s123
    %p135 = scmp.eq.s32.totalorder %s19, 1
    %p136 = por %p134, %p135
    %p138 = scmp.ne.s32.totalorder %s123, %s137
    %p139 = scmp.eq.s32.totalorder %s19, 0
    %p140 = por %p138, %p139
    %s142 = sadd.s32 %s141, 1
    %p145 = scmp.eq.s32.totalorder %s13, 1
    %p146 = scmp.ne.s32.totalorder %s141, %s143
    %p147 = scmp.eq.s32.totalorder %s13, 0
    %p148 = por %p146, %p147
    %p149 = scmp.ne.s32.totalorder %s141, %s143
    %p150 = scmp.eq.s32.totalorder %s18, 1
    %p151 = por %p149, %p150
    %p152 = scmp.ne.s32.totalorder %s143, %s144
    %p153 = scmp.eq.s32.totalorder %s18, 0
    %p154 = por %p152, %p153
    %p155 = scmp.ne.s32.totalorder %s143, %s144
    %p156 = scmp.eq.s32.totalorder %s19, 1
    %p157 = por %p155, %p156
    %p159 = scmp.ne.s32.totalorder %s144, %s158
    %p160 = scmp.eq.s32.totalorder %s19, 0
    %p161 = por %p159, %p160
    %s163 = sadd.s32 %s162, 1
    %p166 = scmp.eq.s32.totalorder %s13, 1
    %p167 = scmp.ne.s32.totalorder %s162, %s164
    %p168 = scmp.eq.s32.totalorder %s13, 0
    %p169 = por %p167, %p168
    %p170 = scmp.ne.s32.totalorder %s162, %s164
    %p171 = scmp.eq.s32.totalorder %s18, 1
    %p172 = por %p170, %p171
    %p173 = scmp.ne.s32.totalorder %s164, %s165
    %p174 = scmp.eq.s32.totalorder %s18, 0
    %p175 = por %p173, %p174
    %p176 = scmp.ne.s32.totalorder %s164, %s165
    %p177 = scmp.eq.s32.totalorder %s19, 1
    %p178 = por %p176, %p177
    %p180 = scmp.ne.s32.totalorder %s165, %s179
    %p181 = scmp.eq.s32.totalorder %s19, 0
    %p182 = por %p180, %p181
    %s183 = ssub.s32 %s13, %s20
    %p184 = scmp.eq.s32.totalorder %s183, 0
    %s186 = sadd.s32 %s185, 1
    %s187 = scalar_select %p184, %s185, %s186
    %p190 = pneg %p184
    %p191 = scmp.eq.s32.totalorder %s13, 1
    %p192 = por %p190, %p191
    %p193 = scmp.ne.s32.totalorder %s185, %s188
    %p194 = scmp.eq.s32.totalorder %s13, 0
    %p195 = por %p193, %p194
    %p196 = scmp.ne.s32.totalorder %s185, %s188
    %p197 = scmp.eq.s32.totalorder %s18, 1
    %p198 = por %p196, %p197
    %p199 = scmp.ne.s32.totalorder %s188, %s189
    %p200 = scmp.eq.s32.totalorder %s18, 0
    %p201 = por %p199, %p200
    %p202 = scmp.ne.s32.totalorder %s188, %s189
    %p203 = scmp.eq.s32.totalorder %s19, 1
    %p204 = por %p202, %p203
    %p206 = scmp.ne.s32.totalorder %s189, %s205
    %p207 = scmp.eq.s32.totalorder %s19, 0
    %p208 = por %p206, %p207
    %p209 = scmp.le.s32.totalorder 1, %s13
    %p210 = scmp.lt.s32.totalorder %s13, 3
    %p211 = pnand %p209, %p210
    %p212 = pneg %p211
    // Predicated region
    $region9: #{tpu_custom_call.1} parent=5 // pred_check
      _
    $region10: #{tpu_custom_call.1} parent=5 // pred_check_branch
      %214 = sbr.rel (%p211) target = $region12
    $region11: #{tpu_custom_call.1} parent=5 // pred_region
      %s215 = ssub.s32 %s13, 1
      // Predicated region
      $region13: #{tpu_custom_call.1} parent=11 // pred_check
        %p216 = pneg %p112
      $region14: #{tpu_custom_call.1} parent=11 // pred_check_branch
        %218 = sbr.rel (%p216) target = $region16
      $region15: #{tpu_custom_call.1} parent=11 // pred_region
        _
      $region16: #{tpu_custom_call.1} parent=11 // pred_fallthru
        _
      // Predicated region
      $region17: #{tpu_custom_call.1} parent=11 // pred_check
        %p219 = pneg %p133
      $region18: #{tpu_custom_call.1} parent=11 // pred_check_branch
        %221 = sbr.rel (%p219) target = $region20
      $region19: #{tpu_custom_call.1} parent=11 // pred_region
        _
      $region20: #{tpu_custom_call.1} parent=11 // pred_fallthru
        _
      // Predicated region
      $region21: #{tpu_custom_call.1} parent=11 // pred_check
        %p222 = pneg %p154
      $region22: #{tpu_custom_call.1} parent=11 // pred_check_branch
        %224 = sbr.rel (%p222) target = $region24
      $region23: #{tpu_custom_call.1} parent=11 // pred_region
        _
      $region24: #{tpu_custom_call.1} parent=11 // pred_fallthru
        _
      // Predicated region
      $region25: #{tpu_custom_call.1} parent=11 // pred_check
        %p225 = pneg %p175
      $region26: #{tpu_custom_call.1} parent=11 // pred_check_branch
        %227 = sbr.rel (%p225) target = $region28
      $region27: #{tpu_custom_call.1} parent=11 // pred_region
        _
      $region28: #{tpu_custom_call.1} parent=11 // pred_fallthru
        _
    $region12: #{tpu_custom_call.1} parent=5 // pred_fallthru
      _
    %p228 = scmp.lt.s32.totalorder %s13, 2
    // Predicated region
    $region29: #{tpu_custom_call.1} parent=5 // pred_check
      %p229 = pneg %p228
    $region30: #{tpu_custom_call.1} parent=5 // pred_check_branch
      %231 = sbr.rel (%p229) target = $region32
    $region31: #{tpu_custom_call.1} parent=5 // pred_region
      // Predicated region
      $region33: #{tpu_custom_call.1} parent=31 // pred_check
        %p232 = pneg %p33
      $region34: #{tpu_custom_call.1} parent=31 // pred_check_branch
        %234 = sbr.rel (%p232) target = $region36
      $region35: #{tpu_custom_call.1} parent=31 // pred_region
        %s235 = smul.u32 16, %s13
        %p236 = scmp.lt.s32.totalorder %s235, 31
        %s237 = scalar_select %p236, %s235, 31
        %s238 = smul.addr %s237, 8
        %s239 = scalar_lea.vmem %s0, %s238
        %s240 = smul.u32 16, %s13
      $region36: #{tpu_custom_call.1} parent=31 // pred_fallthru
        _
      // Predicated region
      $region37: #{tpu_custom_call.1} parent=31 // pred_check
        %p241 = pneg %p59
      $region38: #{tpu_custom_call.1} parent=31 // pred_check_branch
        %243 = sbr.rel (%p241) target = $region40
      $region39: #{tpu_custom_call.1} parent=31 // pred_region
        %s244 = smul.u32 16, %s13
        %p245 = scmp.lt.s32.totalorder %s244, 31
        %s246 = scalar_select %p245, %s244, 31
        %s247 = smul.addr %s246, 8
        %s248 = scalar_lea.vmem %s1, %s247
        %s249 = smul.u32 16, %s13
      $region40: #{tpu_custom_call.1} parent=31 // pred_fallthru
        _
      // Predicated region
      $region41: #{tpu_custom_call.1} parent=31 // pred_check
        %p250 = pneg %p85
      $region42: #{tpu_custom_call.1} parent=31 // pred_check_branch
        %252 = sbr.rel (%p250) target = $region44
      $region43: #{tpu_custom_call.1} parent=31 // pred_region
        %s253 = smul.u32 16, %s13
        %p254 = scmp.lt.s32.totalorder %s253, 31
        %s255 = scalar_select %p254, %s253, 31
        %s256 = smul.addr %s255, 8
        %s257 = scalar_lea.vmem %s2, %s256
        %s258 = smul.u32 16, %s13
      $region44: #{tpu_custom_call.1} parent=31 // pred_fallthru
        _
    $region32: #{tpu_custom_call.1} parent=5 // pred_fallthru
      _
    %p259 = scmp.le.s32.totalorder 1, %s13
    %p260 = scmp.lt.s32.totalorder %s13, 3
    %p261 = pnand %p259, %p260
    %p262 = pneg %p261
    // Predicated region
    $region45: #{tpu_custom_call.1} parent=5 // pred_check
      _
    $region46: #{tpu_custom_call.1} parent=5 // pred_check_branch
      %264 = sbr.rel (%p261) target = $region48
    $region47: #{tpu_custom_call.1} parent=5 // pred_region
      %s265 = ssub.s32 %s13, 1
      %s266 = smul.u32 16, %s18
      %p267 = scmp.lt.s32.totalorder %s266, 31
      %s268 = scalar_select %p267, %s266, 31
      %s269 = smul.addr %s268, 8
      %s270 = scalar_lea.vmem %s0, %s269
      %p271 = pneg %p39
      %p272 = pneg %p36
      %s273 = smul.u32 16, %s18
      %p274 = scmp.lt.s32.totalorder %s273, 31
      %s275 = scalar_select %p274, %s273, 31
      %s276 = smul.addr %s275, 8
      %s277 = scalar_lea.vmem %s1, %s276
      %p278 = pneg %p65
      %p279 = pneg %p62
      %s280 = smul.u32 16, %s18
      %p281 = scmp.lt.s32.totalorder %s280, 31
      %s282 = scalar_select %p281, %s280, 31
      %s283 = smul.addr %s282, 8
      %s284 = scalar_lea.vmem %s2, %s283
      %p285 = pneg %p91
      %p286 = pneg %p88
      %p287 = pneg %p112
      %p288 = pneg %p109
      %p289 = pneg %p133
      %p290 = pneg %p130
      %p291 = pneg %p154
      %p292 = pneg %p151
      %p293 = pneg %p175
      %p294 = pneg %p172
      %p295 = pneg %p201
      %p296 = pneg %p198
      %s297 = smul.u32 16, %s18
      %p298 = scmp.lt.s32.totalorder %s297, 31
      %s299 = scalar_select %p298, %s297, 31
      %s300 = smul.addr %s299, 8
      %s301 = scalar_lea.vmem %s7, %s300
      %s302 = smul.u32 16, %s18
      %p303 = scmp.lt.s32.totalorder %s302, 31
      %s304 = scalar_select %p303, %s302, 31
      %s305 = smul.addr %s304, 8
      %s306 = scalar_lea.vmem %s0, %s305
      %s307 = smul.u32 16, %s18
      %s308 = smul.u32 16, %s18
      %p309 = scmp.lt.s32.totalorder %s308, 31
      %s310 = scalar_select %p309, %s308, 31
      %s311 = smul.addr %s310, 8
      %s312 = scalar_lea.vmem %s1, %s311
      %s313 = smul.u32 16, %s18
      %s314 = smul.u32 16, %s18
      %p315 = scmp.lt.s32.totalorder %s314, 31
      %s316 = scalar_select %p315, %s314, 31
      %s317 = smul.addr %s316, 8
      %s318 = scalar_lea.vmem %s2, %s317
      %s319 = smul.u32 16, %s18
      %s320 = smul.u32 16, %s18
      %p321 = scmp.lt.s32.totalorder %s320, 31
      %s322 = scalar_select %p321, %s320, 31
      %s323 = smul.addr %s322, 8
      %s324 = scalar_lea.vmem %s7, %s323
      %s325 = smul.u32 16, %s18
      %v326 = vld [vmem:[%s306] sm:$0xff]
      %v327 = vld [vmem:[%s306 + $0x8] sm:$0xff]
      %v328 = vld [vmem:[%s306 + $0x10] sm:$0xff]
      %v329 = vld [vmem:[%s306 + $0x18] sm:$0xff]
      %v330 = vld [vmem:[%s306 + $0x20] sm:$0xff]
      %v331 = vld [vmem:[%s306 + $0x28] sm:$0xff]
      %v332 = vld [vmem:[%s306 + $0x30] sm:$0xff]
      %v333 = vld [vmem:[%s306 + $0x38] sm:$0xff]
      %v334 = vld [vmem:[%s306 + $0x40] sm:$0xff]
      %v335 = vld [vmem:[%s306 + $0x48] sm:$0xff]
      %v336 = vld [vmem:[%s306 + $0x50] sm:$0xff]
      %v337 = vld [vmem:[%s306 + $0x58] sm:$0xff]
      %v338 = vld [vmem:[%s306 + $0x60] sm:$0xff]
      %v339 = vld [vmem:[%s306 + $0x68] sm:$0xff]
      %v340 = vld [vmem:[%s306 + $0x70] sm:$0xff]
      %v341 = vld [vmem:[%s306 + $0x78] sm:$0xff]
      %v342 = vld [vmem:[%s3] sm:$0xff]
      %v343 = vld [vmem:[%s3 + $0x8] sm:$0xff]
      %v344 = vld [vmem:[%s3 + $0x10] sm:$0xff]
      %v345 = vld [vmem:[%s3 + $0x18] sm:$0xff]
      %v346 = vld [vmem:[%s312] sm:$0xff]
      %v347 = vld [vmem:[%s312 + $0x8] sm:$0xff]
      %v348 = vld [vmem:[%s312 + $0x10] sm:$0xff]
      %v349 = vld [vmem:[%s312 + $0x18] sm:$0xff]
      %v350 = vld [vmem:[%s312 + $0x20] sm:$0xff]
      %v351 = vld [vmem:[%s312 + $0x28] sm:$0xff]
      %v352 = vld [vmem:[%s312 + $0x30] sm:$0xff]
      %v353 = vld [vmem:[%s312 + $0x38] sm:$0xff]
      %v354 = vld [vmem:[%s312 + $0x40] sm:$0xff]
      %v355 = vld [vmem:[%s312 + $0x48] sm:$0xff]
      %v356 = vld [vmem:[%s312 + $0x50] sm:$0xff]
      %v357 = vld [vmem:[%s312 + $0x58] sm:$0xff]
      %v358 = vld [vmem:[%s312 + $0x60] sm:$0xff]
      %v359 = vld [vmem:[%s312 + $0x68] sm:$0xff]
      %v360 = vld [vmem:[%s312 + $0x70] sm:$0xff]
      %v361 = vld [vmem:[%s312 + $0x78] sm:$0xff]
      %v362 = vld [vmem:[%s4] sm:$0xff]
      %v363 = vld [vmem:[%s4 + $0x8] sm:$0xff]
      %vm364 = vcmask 130048
      %v366 = vsel %vm364, %v346, 0
      %v369 = vsel %vm364, %v347, 0
      %v372 = vsel %vm364, %v348, 0
      %v375 = vsel %vm364, %v349, 0
      %v378 = vsel %vm364, %v350, 0
      %v381 = vsel %vm364, %v351, 0
      %v384 = vsel %vm364, %v352, 0
      %v387 = vsel %vm364, %v353, 0
      %v390 = vsel %vm364, %v354, 0
      %v393 = vsel %vm364, %v355, 0
      %v396 = vsel %vm364, %v356, 0
      %v399 = vsel %vm364, %v357, 0
      %v402 = vsel %vm364, %v358, 0
      %v405 = vsel %vm364, %v359, 0
      %v408 = vsel %vm364, %v360, 0
      %v411 = vsel %vm364, %v361, 0
      %413 = vmatprep.subr.mxu0 0.0
      %414 = vmatpush1.msra.mxu0 %v362
      %415 = vmatprep.subr.mxu0 0.0
      %416 = vmatpush1.msra.mxu0 %v363
      %417 = vmatprep.subr.mxu0 0.0
      %418 = vmatpush1.msra.mxu0 0.0
      %419 = vmatprep.subr.mxu0 0.0
      %420 = vmatpush1.msra.mxu0 0.0
      %421 = vmatprep.subr.mxu0 0.0
      %422 = vmatpush1.msra.mxu0 0.0
      %423 = vmatprep.subr.mxu0 0.0
      %424 = vmatpush1.msra.mxu0 0.0
      %425 = vmatprep.subr.mxu0 0.0
      %426 = vmatpush1.msra.mxu0 0.0
      %427 = vmatprep.subr.mxu0 0.0
      %428 = vmatpush1.msra.mxu0 0.0
      %429 = vmatprep.subr.mxu0 0.0
      %430 = vmatpush1.msra.mxu0 0.0
      %431 = vmatprep.subr.mxu0 0.0
      %432 = vmatpush1.msra.mxu0 0.0
      %433 = vmatprep.subr.mxu0 0.0
      %434 = vmatpush1.msra.mxu0 0.0
      %435 = vmatprep.subr.mxu0 0.0
      %436 = vmatpush1.msra.mxu0 0.0
      %437 = vmatprep.subr.mxu0 0.0
      %438 = vmatpush1.msra.mxu0 0.0
      %439 = vmatprep.subr.mxu0 0.0
      %440 = vmatpush1.msra.mxu0 0.0
      %441 = vmatprep.subr.mxu0 0.0
      %442 = vmatpush1.msra.mxu0 0.0
      %443 = vmatprep.subr.mxu0 0.0
      %444 = vmatpush1.msra.mxu0 0.0
      %445 = vmatprep.subr.mxu0 0.0
      %446 = vmatpush1.msra.mxu0 0.0
      %447 = vmatprep.subr.mxu0 0.0
      %448 = vmatpush1.msra.mxu0 0.0
      %449 = vmatprep.subr.mxu0 0.0
      %450 = vmatpush1.msra.mxu0 0.0
      %451 = vmatprep.subr.mxu0 0.0
      %452 = vmatpush1.msra.mxu0 0.0
      %453 = vmatprep.subr.mxu0 0.0
      %454 = vmatpush1.msra.mxu0 0.0
      %455 = vmatprep.subr.mxu0 0.0
      %456 = vmatpush1.msra.mxu0 0.0
      %457 = vmatprep.subr.mxu0 0.0
      %458 = vmatpush1.msra.mxu0 0.0
      %459 = vmatprep.subr.mxu0 0.0
      %460 = vmatpush1.msra.mxu0 0.0
      %461 = vmatprep.subr.mxu0 0.0
      %462 = vmatpush1.msra.mxu0 0.0
      %463 = vmatprep.subr.mxu0 0.0
      %464 = vmatpush1.msra.mxu0 0.0
      %465 = vmatprep.subr.mxu0 0.0
      %466 = vmatpush1.msra.mxu0 0.0
      %467 = vmatprep.subr.mxu0 0.0
      %468 = vmatpush1.msra.mxu0 0.0
      %469 = vmatprep.subr.mxu0 0.0
      %470 = vmatpush1.msra.mxu0 0.0
      %471 = vmatprep.subr.mxu0 0.0
      %472 = vmatpush1.msra.mxu0 0.0
      %473 = vmatprep.subr.mxu0 0.0
      %474 = vmatpush1.msra.mxu0 0.0
      %475 = vmatprep.subr.mxu0 0.0
      %476 = vmatpush1.msra.mxu0 0.0
      %477 = vmatprep.mubr.f32.mxu0 0.0
      %478 = vmatmul.mubr.f32.gmra.mrb[0].mxu0 %v366
      %v479 = vpop.f32.mrb[0].mxu0
      %v480 = vadd.f32 0.0, %v479
      %v481 = vpop.f32.mrb[0].mxu0
      %482 = vmatprep.mubr.f32.mxu0 0.0
      %483 = vmatmul.mubr.f32.gmra.mrb[0].mxu0 %v369
      %v484 = vpop.f32.mrb[0].mxu0
      %v485 = vadd.f32 0.0, %v484
      %v486 = vpop.f32.mrb[0].mxu0
      %487 = vmatprep.mubr.f32.mxu0 0.0
      %488 = vmatmul.mubr.f32.gmra.mrb[0].mxu0 %v372
      %v489 = vpop.f32.mrb[0].mxu0
      %v490 = vadd.f32 0.0, %v489
      %v491 = vpop.f32.mrb[0].mxu0
      %492 = vmatprep.mubr.f32.mxu0 0.0
      %493 = vmatmul.mubr.f32.gmra.mrb[0].mxu0 %v375
      %v494 = vpop.f32.mrb[0].mxu0
      %v495 = vadd.f32 0.0, %v494
      %v496 = vpop.f32.mrb[0].mxu0
      %497 = vmatprep.mubr.f32.mxu0 0.0
      %498 = vmatmul.mubr.f32.gmra.mrb[0].mxu0 %v378
      %v499 = vpop.f32.mrb[0].mxu0
      %v500 = vadd.f32 0.0, %v499
      %v501 = vpop.f32.mrb[0].mxu0
      %502 = vmatprep.mubr.f32.mxu0 0.0
      %503 = vmatmul.mubr.f32.gmra.mrb[0].mxu0 %v381
      %v504 = vpop.f32.mrb[0].mxu0
      %v505 = vadd.f32 0.0, %v504
      %v506 = vpop.f32.mrb[0].mxu0
      %507 = vmatprep.mubr.f32.mxu0 0.0
      %508 = vmatmul.mubr.f32.gmra.mrb[0].mxu0 %v384
      %v509 = vpop.f32.mrb[0].mxu0
      %v510 = vadd.f32 0.0, %v509
      %v511 = vpop.f32.mrb[0].mxu0
      %512 = vmatprep.mubr.f32.mxu0 0.0
      %513 = vmatmul.mubr.f32.gmra.mrb[0].mxu0 %v387
      %v514 = vpop.f32.mrb[0].mxu0
      %v515 = vadd.f32 0.0, %v514
      %v516 = vpop.f32.mrb[0].mxu0
      %517 = vmatprep.mubr.f32.mxu0 0.0
      %518 = vmatmul.mubr.f32.gmra.mrb[0].mxu0 %v390
      %v519 = vpop.f32.mrb[0].mxu0
      %v520 = vadd.f32 0.0, %v519
      %v521 = vpop.f32.mrb[0].mxu0
      %522 = vmatprep.mubr.f32.mxu0 0.0
      %523 = vmatmul.mubr.f32.gmra.mrb[0].mxu0 %v393
      %v524 = vpop.f32.mrb[0].mxu0
      %v525 = vadd.f32 0.0, %v524
      %v526 = vpop.f32.mrb[0].mxu0
      %527 = vmatprep.mubr.f32.mxu0 0.0
      %528 = vmatmul.mubr.f32.gmra.mrb[0].mxu0 %v396
      %v529 = vpop.f32.mrb[0].mxu0
      %v530 = vadd.f32 0.0, %v529
      %v531 = vpop.f32.mrb[0].mxu0
      %532 = vmatprep.mubr.f32.mxu0 0.0
      %533 = vmatmul.mubr.f32.gmra.mrb[0].mxu0 %v399
      %v534 = vpop.f32.mrb[0].mxu0
      %v535 = vadd.f32 0.0, %v534
      %v536 = vpop.f32.mrb[0].mxu0
      %537 = vmatprep.mubr.f32.mxu0 0.0
      %538 = vmatmul.mubr.f32.gmra.mrb[0].mxu0 %v402
      %v539 = vpop.f32.mrb[0].mxu0
      %v540 = vadd.f32 0.0, %v539
      %v541 = vpop.f32.mrb[0].mxu0
      %542 = vmatprep.mubr.f32.mxu0 0.0
      %543 = vmatmul.mubr.f32.gmra.mrb[0].mxu0 %v405
      %v544 = vpop.f32.mrb[0].mxu0
      %v545 = vadd.f32 0.0, %v544
      %v546 = vpop.f32.mrb[0].mxu0
      %547 = vmatprep.mubr.f32.mxu0 0.0
      %548 = vmatmul.mubr.f32.gmra.mrb[0].mxu0 %v408
      %v549 = vpop.f32.mrb[0].mxu0
      %v550 = vadd.f32 0.0, %v549
      %v551 = vpop.f32.mrb[0].mxu0
      %552 = vmatprep.mubr.f32.mxu0 0.0
      %553 = vmatmul.mubr.f32.gmra.mrb[0].mxu0 %v411
      %v554 = vpop.f32.mrb[0].mxu0
      %v555 = vadd.f32 0.0, %v554
      %v556 = vpop.f32.mrb[0].mxu0
      %557 = vdwg.mxu0
      %vm558 = vcmask 261120
      %v560 = vsel %vm558, %v326, 0
      %v563 = vsel %vm558, %v327, 0
      %v566 = vsel %vm558, %v328, 0
      %v569 = vsel %vm558, %v329, 0
      %v572 = vsel %vm558, %v330, 0
      %v575 = vsel %vm558, %v331, 0
      %v578 = vsel %vm558, %v332, 0
      %v581 = vsel %vm558, %v333, 0
      %v584 = vsel %vm558, %v334, 0
      %v587 = vsel %vm558, %v335, 0
      %v590 = vsel %vm558, %v336, 0
      %v593 = vsel %vm558, %v337, 0
      %v596 = vsel %vm558, %v338, 0
      %v599 = vsel %vm558, %v339, 0
      %v602 = vsel %vm558, %v340, 0
      %v605 = vsel %vm558, %v341, 0
      %607 = vmatprep.subr.mxu0 0.0
      %608 = vmatpush1.msra.mxu0 %v342
      %609 = vmatprep.subr.mxu0 0.0
      %610 = vmatpush1.msra.mxu0 %v343
      %611 = vmatprep.subr.mxu0 0.0
      %612 = vmatpush1.msra.mxu0 %v344
      %613 = vmatprep.subr.mxu0 0.0
      %614 = vmatpush1.msra.mxu0 %v345
      %615 = vmatprep.subr.mxu0 0.0
      %616 = vmatpush1.msra.mxu0 0.0
      %617 = vmatprep.subr.mxu0 0.0
      %618 = vmatpush1.msra.mxu0 0.0
      %619 = vmatprep.subr.mxu0 0.0
      %620 = vmatpush1.msra.mxu0 0.0
      %621 = vmatprep.subr.mxu0 0.0
      %622 = vmatpush1.msra.mxu0 0.0
      %623 = vmatprep.subr.mxu0 0.0
      %624 = vmatpush1.msra.mxu0 0.0
      %625 = vmatprep.subr.mxu0 0.0
      %626 = vmatpush1.msra.mxu0 0.0
      %627 = vmatprep.subr.mxu0 0.0
      %628 = vmatpush1.msra.mxu0 0.0
      %629 = vmatprep.subr.mxu0 0.0
      %630 = vmatpush1.msra.mxu0 0.0
      %631 = vmatprep.subr.mxu0 0.0
      %632 = vmatpush1.msra.mxu0 0.0
      %633 = vmatprep.subr.mxu0 0.0
      %634 = vmatpush1.msra.mxu0 0.0
      %635 = vmatprep.subr.mxu0 0.0
      %636 = vmatpush1.msra.mxu0 0.0
      %637 = vmatprep.subr.mxu0 0.0
      %638 = vmatpush1.msra.mxu0 0.0
      %639 = vmatprep.subr.mxu0 0.0
      %640 = vmatpush1.msra.mxu0 0.0
      %641 = vmatprep.subr.mxu0 0.0
      %642 = vmatpush1.msra.mxu0 0.0
      %643 = vmatprep.subr.mxu0 0.0
      %644 = vmatpush1.msra.mxu0 0.0
      %645 = vmatprep.subr.mxu0 0.0
      %646 = vmatpush1.msra.mxu0 0.0
      %647 = vmatprep.subr.mxu0 0.0
      %648 = vmatpush1.msra.mxu0 0.0
      %649 = vmatprep.subr.mxu0 0.0
      %650 = vmatpush1.msra.mxu0 0.0
      %651 = vmatprep.subr.mxu0 0.0
      %652 = vmatpush1.msra.mxu0 0.0
      %653 = vmatprep.subr.mxu0 0.0
      %654 = vmatpush1.msra.mxu0 0.0
      %655 = vmatprep.subr.mxu0 0.0
      %656 = vmatpush1.msra.mxu0 0.0
      %657 = vmatprep.subr.mxu0 0.0
      %658 = vmatpush1.msra.mxu0 0.0
      %659 = vmatprep.subr.mxu0 0.0
      %660 = vmatpush1.msra.mxu0 0.0
      %661 = vmatprep.subr.mxu0 0.0
      %662 = vmatpush1.msra.mxu0 0.0
      %663 = vmatprep.subr.mxu0 0.0
      %664 = vmatpush1.msra.mxu0 0.0
      %665 = vmatprep.subr.mxu0 0.0
      %666 = vmatpush1.msra.mxu0 0.0
      %667 = vmatprep.subr.mxu0 0.0
      %668 = vmatpush1.msra.mxu0 0.0
      %669 = vmatprep.subr.mxu0 0.0
      %670 = vmatpush1.msra.mxu0 0.0
      %671 = vmatprep.mubr.f32.mxu0 0.0
      %672 = vmatmul.mubr.f32.gmra.mrb[0].mxu0 %v560
      %v673 = vpop.f32.mrb[0].mxu0
      %v674 = vadd.f32 %v480, %v673
      %v675 = vpop.f32.mrb[0].mxu0
      %676 = vmatprep.mubr.f32.mxu0 0.0
      %677 = vmatmul.mubr.f32.gmra.mrb[0].mxu0 %v563
      %v678 = vpop.f32.mrb[0].mxu0
      %v679 = vadd.f32 %v485, %v678
      %v680 = vpop.f32.mrb[0].mxu0
      %681 = vmatprep.mubr.f32.mxu0 0.0
      %682 = vmatmul.mubr.f32.gmra.mrb[0].mxu0 %v566
      %v683 = vpop.f32.mrb[0].mxu0
      %v684 = vadd.f32 %v490, %v683
      %v685 = vpop.f32.mrb[0].mxu0
      %686 = vmatprep.mubr.f32.mxu0 0.0
      %687 = vmatmul.mubr.f32.gmra.mrb[0].mxu0 %v569
      %v688 = vpop.f32.mrb[0].mxu0
      %v689 = vadd.f32 %v495, %v688
      %v690 = vpop.f32.mrb[0].mxu0
      %691 = vmatprep.mubr.f32.mxu0 0.0
      %692 = vmatmul.mubr.f32.gmra.mrb[0].mxu0 %v572
      %v693 = vpop.f32.mrb[0].mxu0
      %v694 = vadd.f32 %v500, %v693
      %v695 = vpop.f32.mrb[0].mxu0
      %696 = vmatprep.mubr.f32.mxu0 0.0
      %697 = vmatmul.mubr.f32.gmra.mrb[0].mxu0 %v575
      %v698 = vpop.f32.mrb[0].mxu0
      %v699 = vadd.f32 %v505, %v698
      %v700 = vpop.f32.mrb[0].mxu0
      %701 = vmatprep.mubr.f32.mxu0 0.0
      %702 = vmatmul.mubr.f32.gmra.mrb[0].mxu0 %v578
      %v703 = vpop.f32.mrb[0].mxu0
      %v704 = vadd.f32 %v510, %v703
      %v705 = vpop.f32.mrb[0].mxu0
      %706 = vmatprep.mubr.f32.mxu0 0.0
      %707 = vmatmul.mubr.f32.gmra.mrb[0].mxu0 %v581
      %v708 = vpop.f32.mrb[0].mxu0
      %v709 = vadd.f32 %v515, %v708
      %v710 = vpop.f32.mrb[0].mxu0
      %711 = vmatprep.mubr.f32.mxu0 0.0
      %712 = vmatmul.mubr.f32.gmra.mrb[0].mxu0 %v584
      %v713 = vpop.f32.mrb[0].mxu0
      %v714 = vadd.f32 %v520, %v713
      %v715 = vpop.f32.mrb[0].mxu0
      %716 = vmatprep.mubr.f32.mxu0 0.0
      %717 = vmatmul.mubr.f32.gmra.mrb[0].mxu0 %v587
      %v718 = vpop.f32.mrb[0].mxu0
      %v719 = vadd.f32 %v525, %v718
      %v720 = vpop.f32.mrb[0].mxu0
      %721 = vmatprep.mubr.f32.mxu0 0.0
      %722 = vmatmul.mubr.f32.gmra.mrb[0].mxu0 %v590
      %v723 = vpop.f32.mrb[0].mxu0
      %v724 = vadd.f32 %v530, %v723
      %v725 = vpop.f32.mrb[0].mxu0
      %726 = vmatprep.mubr.f32.mxu0 0.0
      %727 = vmatmul.mubr.f32.gmra.mrb[0].mxu0 %v593
      %v728 = vpop.f32.mrb[0].mxu0
      %v729 = vadd.f32 %v535, %v728
      %v730 = vpop.f32.mrb[0].mxu0
      %731 = vmatprep.mubr.f32.mxu0 0.0
      %732 = vmatmul.mubr.f32.gmra.mrb[0].mxu0 %v596
      %v733 = vpop.f32.mrb[0].mxu0
      %v734 = vadd.f32 %v540, %v733
      %v735 = vpop.f32.mrb[0].mxu0
      %736 = vmatprep.mubr.f32.mxu0 0.0
      %737 = vmatmul.mubr.f32.gmra.mrb[0].mxu0 %v599
      %v738 = vpop.f32.mrb[0].mxu0
      %v739 = vadd.f32 %v545, %v738
      %v740 = vpop.f32.mrb[0].mxu0
      %741 = vmatprep.mubr.f32.mxu0 0.0
      %742 = vmatmul.mubr.f32.gmra.mrb[0].mxu0 %v602
      %v743 = vpop.f32.mrb[0].mxu0
      %v744 = vadd.f32 %v550, %v743
      %v745 = vpop.f32.mrb[0].mxu0
      %746 = vmatprep.mubr.f32.mxu0 0.0
      %747 = vmatmul.mubr.f32.gmra.mrb[0].mxu0 %v605
      %v748 = vpop.f32.mrb[0].mxu0
      %v749 = vadd.f32 %v555, %v748
      %v750 = vpop.f32.mrb[0].mxu0
      %751 = vdwg.mxu0
      %v752 = vld [vmem:[%s318] sm:$0xff]
      %v753 = vld [vmem:[%s318 + $0x8] sm:$0xff]
      %v754 = vld [vmem:[%s318 + $0x10] sm:$0xff]
      %v755 = vld [vmem:[%s318 + $0x18] sm:$0xff]
      %v756 = vld [vmem:[%s318 + $0x20] sm:$0xff]
      %v757 = vld [vmem:[%s318 + $0x28] sm:$0xff]
      %v758 = vld [vmem:[%s318 + $0x30] sm:$0xff]
      %v759 = vld [vmem:[%s318 + $0x38] sm:$0xff]
      %v760 = vld [vmem:[%s318 + $0x40] sm:$0xff]
      %v761 = vld [vmem:[%s318 + $0x48] sm:$0xff]
      %v762 = vld [vmem:[%s318 + $0x50] sm:$0xff]
      %v763 = vld [vmem:[%s318 + $0x58] sm:$0xff]
      %v764 = vld [vmem:[%s318 + $0x60] sm:$0xff]
      %v765 = vld [vmem:[%s318 + $0x68] sm:$0xff]
      %v766 = vld [vmem:[%s318 + $0x70] sm:$0xff]
      %v767 = vld [vmem:[%s318 + $0x78] sm:$0xff]
      %v768 = vld [vmem:[%s5] sm:$0xff]
      %v769 = vld [vmem:[%s5 + $0x8] sm:$0xff]
      %v771 = vsel %vm364, %v752, 0
      %v774 = vsel %vm364, %v753, 0
      %v777 = vsel %vm364, %v754, 0
      %v780 = vsel %vm364, %v755, 0
      %v783 = vsel %vm364, %v756, 0
      %v786 = vsel %vm364, %v757, 0
      %v789 = vsel %vm364, %v758, 0
      %v792 = vsel %vm364, %v759, 0
      %v795 = vsel %vm364, %v760, 0
      %v798 = vsel %vm364, %v761, 0
      %v801 = vsel %vm364, %v762, 0
      %v804 = vsel %vm364, %v763, 0
      %v807 = vsel %vm364, %v764, 0
      %v810 = vsel %vm364, %v765, 0
      %v813 = vsel %vm364, %v766, 0
      %v816 = vsel %vm364, %v767, 0
      %818 = vmatprep.subr.mxu0 0.0
      %819 = vmatpush1.msra.mxu0 %v768
      %820 = vmatprep.subr.mxu0 0.0
      %821 = vmatpush1.msra.mxu0 %v769
      %822 = vmatprep.subr.mxu0 0.0
      %823 = vmatpush1.msra.mxu0 0.0
      %824 = vmatprep.subr.mxu0 0.0
      %825 = vmatpush1.msra.mxu0 0.0
      %826 = vmatprep.subr.mxu0 0.0
      %827 = vmatpush1.msra.mxu0 0.0
      %828 = vmatprep.subr.mxu0 0.0
      %829 = vmatpush1.msra.mxu0 0.0
      %830 = vmatprep.subr.mxu0 0.0
      %831 = vmatpush1.msra.mxu0 0.0
      %832 = vmatprep.subr.mxu0 0.0
      %833 = vmatpush1.msra.mxu0 0.0
      %834 = vmatprep.subr.mxu0 0.0
      %835 = vmatpush1.msra.mxu0 0.0
      %836 = vmatprep.subr.mxu0 0.0
      %837 = vmatpush1.msra.mxu0 0.0
      %838 = vmatprep.subr.mxu0 0.0
      %839 = vmatpush1.msra.mxu0 0.0
      %840 = vmatprep.subr.mxu0 0.0
      %841 = vmatpush1.msra.mxu0 0.0
      %842 = vmatprep.subr.mxu0 0.0
      %843 = vmatpush1.msra.mxu0 0.0
      %844 = vmatprep.subr.mxu0 0.0
      %845 = vmatpush1.msra.mxu0 0.0
      %846 = vmatprep.subr.mxu0 0.0
      %847 = vmatpush1.msra.mxu0 0.0
      %848 = vmatprep.subr.mxu0 0.0
      %849 = vmatpush1.msra.mxu0 0.0
      %850 = vmatprep.subr.mxu0 0.0
      %851 = vmatpush1.msra.mxu0 0.0
      %852 = vmatprep.subr.mxu0 0.0
      %853 = vmatpush1.msra.mxu0 0.0
      %854 = vmatprep.subr.mxu0 0.0
      %855 = vmatpush1.msra.mxu0 0.0
      %856 = vmatprep.subr.mxu0 0.0
      %857 = vmatpush1.msra.mxu0 0.0
      %858 = vmatprep.subr.mxu0 0.0
      %859 = vmatpush1.msra.mxu0 0.0
      %860 = vmatprep.subr.mxu0 0.0
      %861 = vmatpush1.msra.mxu0 0.0
      %862 = vmatprep.subr.mxu0 0.0
      %863 = vmatpush1.msra.mxu0 0.0
      %864 = vmatprep.subr.mxu0 0.0
      %865 = vmatpush1.msra.mxu0 0.0
      %866 = vmatprep.subr.mxu0 0.0
      %867 = vmatpush1.msra.mxu0 0.0
      %868 = vmatprep.subr.mxu0 0.0
      %869 = vmatpush1.msra.mxu0 0.0
      %870 = vmatprep.subr.mxu0 0.0
      %871 = vmatpush1.msra.mxu0 0.0
      %872 = vmatprep.subr.mxu0 0.0
      %873 = vmatpush1.msra.mxu0 0.0
      %874 = vmatprep.subr.mxu0 0.0
      %875 = vmatpush1.msra.mxu0 0.0
      %876 = vmatprep.subr.mxu0 0.0
      %877 = vmatpush1.msra.mxu0 0.0
      %878 = vmatprep.subr.mxu0 0.0
      %879 = vmatpush1.msra.mxu0 0.0
      %880 = vmatprep.subr.mxu0 0.0
      %881 = vmatpush1.msra.mxu0 0.0
      %882 = vmatprep.mubr.f32.mxu0 0.0
      %883 = vmatmul.mubr.f32.gmra.mrb[0].mxu0 %v771
      %v884 = vpop.f32.mrb[0].mxu0
      %v885 = vadd.f32 0.0, %v884
      %v886 = vpop.f32.mrb[0].mxu0
      %887 = vmatprep.mubr.f32.mxu0 0.0
      %888 = vmatmul.mubr.f32.gmra.mrb[0].mxu0 %v774
      %v889 = vpop.f32.mrb[0].mxu0
      %v890 = vadd.f32 0.0, %v889
      %v891 = vpop.f32.mrb[0].mxu0
      %892 = vmatprep.mubr.f32.mxu0 0.0
      %893 = vmatmul.mubr.f32.gmra.mrb[0].mxu0 %v777
      %v894 = vpop.f32.mrb[0].mxu0
      %v895 = vadd.f32 0.0, %v894
      %v896 = vpop.f32.mrb[0].mxu0
      %897 = vmatprep.mubr.f32.mxu0 0.0
      %898 = vmatmul.mubr.f32.gmra.mrb[0].mxu0 %v780
      %v899 = vpop.f32.mrb[0].mxu0
      %v900 = vadd.f32 0.0, %v899
      %v901 = vpop.f32.mrb[0].mxu0
      %902 = vmatprep.mubr.f32.mxu0 0.0
      %903 = vmatmul.mubr.f32.gmra.mrb[0].mxu0 %v783
      %v904 = vpop.f32.mrb[0].mxu0
      %v905 = vadd.f32 0.0, %v904
      %v906 = vpop.f32.mrb[0].mxu0
      %907 = vmatprep.mubr.f32.mxu0 0.0
      %908 = vmatmul.mubr.f32.gmra.mrb[0].mxu0 %v786
      %v909 = vpop.f32.mrb[0].mxu0
      %v910 = vadd.f32 0.0, %v909
      %v911 = vpop.f32.mrb[0].mxu0
      %912 = vmatprep.mubr.f32.mxu0 0.0
      %913 = vmatmul.mubr.f32.gmra.mrb[0].mxu0 %v789
      %v914 = vpop.f32.mrb[0].mxu0
      %v915 = vadd.f32 0.0, %v914
      %v916 = vpop.f32.mrb[0].mxu0
      %917 = vmatprep.mubr.f32.mxu0 0.0
      %918 = vmatmul.mubr.f32.gmra.mrb[0].mxu0 %v792
      %v919 = vpop.f32.mrb[0].mxu0
      %v920 = vadd.f32 0.0, %v919
      %v921 = vpop.f32.mrb[0].mxu0
      %922 = vmatprep.mubr.f32.mxu0 0.0
      %923 = vmatmul.mubr.f32.gmra.mrb[0].mxu0 %v795
      %v924 = vpop.f32.mrb[0].mxu0
      %v925 = vadd.f32 0.0, %v924
      %v926 = vpop.f32.mrb[0].mxu0
      %927 = vmatprep.mubr.f32.mxu0 0.0
      %928 = vmatmul.mubr.f32.gmra.mrb[0].mxu0 %v798
      %v929 = vpop.f32.mrb[0].mxu0
      %v930 = vadd.f32 0.0, %v929
      %v931 = vpop.f32.mrb[0].mxu0
      %932 = vmatprep.mubr.f32.mxu0 0.0
      %933 = vmatmul.mubr.f32.gmra.mrb[0].mxu0 %v801
      %v934 = vpop.f32.mrb[0].mxu0
      %v935 = vadd.f32 0.0, %v934
      %v936 = vpop.f32.mrb[0].mxu0
      %937 = vmatprep.mubr.f32.mxu0 0.0
      %938 = vmatmul.mubr.f32.gmra.mrb[0].mxu0 %v804
      %v939 = vpop.f32.mrb[0].mxu0
      %v940 = vadd.f32 0.0, %v939
      %v941 = vpop.f32.mrb[0].mxu0
      %942 = vmatprep.mubr.f32.mxu0 0.0
      %943 = vmatmul.mubr.f32.gmra.mrb[0].mxu0 %v807
      %v944 = vpop.f32.mrb[0].mxu0
      %v945 = vadd.f32 0.0, %v944
      %v946 = vpop.f32.mrb[0].mxu0
      %947 = vmatprep.mubr.f32.mxu0 0.0
      %948 = vmatmul.mubr.f32.gmra.mrb[0].mxu0 %v810
      %v949 = vpop.f32.mrb[0].mxu0
      %v950 = vadd.f32 0.0, %v949
      %v951 = vpop.f32.mrb[0].mxu0
      %952 = vmatprep.mubr.f32.mxu0 0.0
      %953 = vmatmul.mubr.f32.gmra.mrb[0].mxu0 %v813
      %v954 = vpop.f32.mrb[0].mxu0
      %v955 = vadd.f32 0.0, %v954
      %v956 = vpop.f32.mrb[0].mxu0
      %957 = vmatprep.mubr.f32.mxu0 0.0
      %958 = vmatmul.mubr.f32.gmra.mrb[0].mxu0 %v816
      %v959 = vpop.f32.mrb[0].mxu0
      %v960 = vadd.f32 0.0, %v959
      %v961 = vpop.f32.mrb[0].mxu0
      %962 = vdwg.mxu0
      %v963 = vadd.f32 %v674, %v885
      %v964 = vadd.f32 %v679, %v890
      %v965 = vadd.f32 %v684, %v895
      %v966 = vadd.f32 %v689, %v900
      %v967 = vadd.f32 %v694, %v905
      %v968 = vadd.f32 %v699, %v910
      %v969 = vadd.f32 %v704, %v915
      %v970 = vadd.f32 %v709, %v920
      %v971 = vadd.f32 %v714, %v925
      %v972 = vadd.f32 %v719, %v930
      %v973 = vadd.f32 %v724, %v935
      %v974 = vadd.f32 %v729, %v940
      %v975 = vadd.f32 %v734, %v945
      %v976 = vadd.f32 %v739, %v950
      %v977 = vadd.f32 %v744, %v955
      %v978 = vadd.f32 %v749, %v960
      %v979 = vld [vmem:[%s6] sm:$0x1]
      %v981 = vlaneseq
      %v982 = vshrl.u32 %v981, 7
      %v983 = vsub.s32 0, %v982
      %v984 = vrot.slane %v979, %v983
      %v986 = vadd.f32 %v963, %v984
      %v987 = vadd.f32 %v964, %v984
      %v988 = vadd.f32 %v965, %v984
      %v989 = vadd.f32 %v966, %v984
      %v990 = vadd.f32 %v967, %v984
      %v991 = vadd.f32 %v968, %v984
      %v992 = vadd.f32 %v969, %v984
      %v993 = vadd.f32 %v970, %v984
      %v994 = vadd.f32 %v971, %v984
      %v995 = vadd.f32 %v972, %v984
      %v996 = vadd.f32 %v973, %v984
      %v997 = vadd.f32 %v974, %v984
      %v998 = vadd.f32 %v975, %v984
      %v999 = vadd.f32 %v976, %v984
      %v1000 = vadd.f32 %v977, %v984
      %v1001 = vadd.f32 %v978, %v984
      %v1002 = vmax.f32 %v986, 0.0
      %v1003 = vmax.f32 %v987, 0.0
      %v1004 = vmax.f32 %v988, 0.0
      %v1005 = vmax.f32 %v989, 0.0
      %v1006 = vmax.f32 %v990, 0.0
      %v1007 = vmax.f32 %v991, 0.0
      %v1008 = vmax.f32 %v992, 0.0
      %v1009 = vmax.f32 %v993, 0.0
      %v1010 = vmax.f32 %v994, 0.0
      %v1011 = vmax.f32 %v995, 0.0
      %v1012 = vmax.f32 %v996, 0.0
      %v1013 = vmax.f32 %v997, 0.0
      %v1014 = vmax.f32 %v998, 0.0
      %v1015 = vmax.f32 %v999, 0.0
      %v1016 = vmax.f32 %v1000, 0.0
      %v1017 = vmax.f32 %v1001, 0.0
      %vm1018 = vcmask 162816
      %1019 = vst.msk [vmem:[%s324] sm:$0xff] %vm1018, %v1002
      %1020 = vst.msk [vmem:[%s324 + $0x8] sm:$0xff] %vm1018, %v1003
      %1021 = vst.msk [vmem:[%s324 + $0x10] sm:$0xff] %vm1018, %v1004
      %1022 = vst.msk [vmem:[%s324 + $0x18] sm:$0xff] %vm1018, %v1005
      %1023 = vst.msk [vmem:[%s324 + $0x20] sm:$0xff] %vm1018, %v1006
      %1024 = vst.msk [vmem:[%s324 + $0x28] sm:$0xff] %vm1018, %v1007
      %1025 = vst.msk [vmem:[%s324 + $0x30] sm:$0xff] %vm1018, %v1008
      %1026 = vst.msk [vmem:[%s324 + $0x38] sm:$0xff] %vm1018, %v1009
      %1027 = vst.msk [vmem:[%s324 + $0x40] sm:$0xff] %vm1018, %v1010
      %1028 = vst.msk [vmem:[%s324 + $0x48] sm:$0xff] %vm1018, %v1011
      %1029 = vst.msk [vmem:[%s324 + $0x50] sm:$0xff] %vm1018, %v1012
      %1030 = vst.msk [vmem:[%s324 + $0x58] sm:$0xff] %vm1018, %v1013
      %1031 = vst.msk [vmem:[%s324 + $0x60] sm:$0xff] %vm1018, %v1014
      %1032 = vst.msk [vmem:[%s324 + $0x68] sm:$0xff] %vm1018, %v1015
      %1033 = vst.msk [vmem:[%s324 + $0x70] sm:$0xff] %vm1018, %v1016
      %1034 = vst.msk [vmem:[%s324 + $0x78] sm:$0xff] %vm1018, %v1017
      %s1035 = smul.u32 16, %s18
      %p1036 = scmp.lt.s32.totalorder %s1035, 31
      %s1037 = scalar_select %p1036, %s1035, 31
      %s1038 = smul.addr %s1037, 8
      %s1039 = scalar_lea.vmem %s7, %s1038
      // Predicated region
      $region49: #{tpu_custom_call.1} parent=47 // pred_check
        %p1040 = pneg %p198
      $region50: #{tpu_custom_call.1} parent=47 // pred_check_branch
        %1042 = sbr.rel (%p1040) target = $region52
      $region51: #{tpu_custom_call.1} parent=47 // pred_region
        %s1043 = smul.u32 16, %s18
      $region52: #{tpu_custom_call.1} parent=47 // pred_fallthru
        _
    $region48: #{tpu_custom_call.1} parent=5 // pred_fallthru
      _
    %p1044 = scmp.le.s32.totalorder 2, %s13
    // Predicated region
    $region53: #{tpu_custom_call.1} parent=5 // pred_check
      %p1045 = pneg %p1044
    $region54: #{tpu_custom_call.1} parent=5 // pred_check_branch
      %1047 = sbr.rel (%p1045) target = $region56
    $region55: #{tpu_custom_call.1} parent=5 // pred_region
      %s1048 = ssub.s32 %s13, 2
      // Predicated region
      $region57: #{tpu_custom_call.1} parent=55 // pred_check
        %p1049 = pneg %p204
      $region58: #{tpu_custom_call.1} parent=55 // pred_check_branch
        %1051 = sbr.rel (%p1049) target = $region60
      $region59: #{tpu_custom_call.1} parent=55 // pred_region
        %s1052 = smul.u32 16, %s19
        %p1053 = scmp.lt.s32.totalorder %s1052, 31
        %s1054 = scalar_select %p1053, %s1052, 31
        %s1055 = smul.addr %s1054, 8
        %s1056 = scalar_lea.vmem %s7, %s1055
      $region60: #{tpu_custom_call.1} parent=55 // pred_fallthru
        _
    $region56: #{tpu_custom_call.1} parent=5 // pred_fallthru
      _
  $region6: #{tpu_custom_call.1} parent=0 // loop_footer
    %s17 = sadd.s32 1, %s13
  $region7: #{tpu_custom_call.1} parent=0 // loop_footer_branch
    %12 = sbr.rel target = $region3
  $region8: #{tpu_custom_call.1} parent=0 // loop_exit
    _

</llo_original>
